<compile_context>
chip_gen: v7x
topology: tpu7x:2x2x1
jax: 0.10.0
libtpu: 0.0.40
codegen_flags: <defaults>
</compile_context>

<pallas_src>
import numpy as np
import jax
import jax.numpy as jnp
from jax.experimental import pallas as pl
from jax.experimental.pallas import tpu as pltpu


def _dropout_threshold(p):
    """Drop iff bits < threshold, so P(drop) = threshold / 2^32 ~= p.

    (Clamped to 2^32-1, so for p just below 1.0 the drop probability is low by
    at most 2^-32 — negligible.)
    """
    return np.uint32(min(int(round(float(p) * 2.0 ** 32)), 2 ** 32 - 1))


def _make_sdpa_kernel(scale_factor, dropout_p, has_mask, mode):
    """mode in {"none", "full", "prng", "bits"}.

    Kernel ref order (per batch, squeezed):
      [q (S,D), k (S,D), v (S,D)]      (omitted when mode == "full")
      [mask (S,1) int32]               (if has_mask)
      [seed (1,) int32 in SMEM]        (if mode == "prng")
      [bits (S,S) uint32]              (if mode == "bits")
      o (S,D)
    """
    scale_factor = float(scale_factor)
    dropout_p = float(dropout_p)

    def kernel(*refs):
        o_ref = refs[-1]
        idx = 0
        if mode != "full":
            q_ref, k_ref, v_ref = refs[0], refs[1], refs[2]
            idx = 3
        mask_ref = None
        if has_mask:
            mask_ref = refs[idx]
            idx += 1

        if mode == "full":
            # torch F.dropout(p=1) multiplies by 0: finite -> 0, -inf -> NaN.
            # Masked query rows become NaN, everything else 0 — independent of
            # Q/K/V (for finite inputs), so they are never loaded.
            if has_mask:
                masked = mask_ref[...] != 0                       # (S, 1)
                o_ref[...] = jnp.where(
                    masked, jnp.float32(jnp.nan),
                    jnp.zeros(o_ref.shape, jnp.float32)).astype(o_ref.dtype)
            else:
                o_ref[...] = jnp.zeros_like(o_ref)
            return

        # qk = q @ k^T, contracting on D directly (no XLU transpose), bf16 MXU
        # feed with f32 accumulation.
        qk = jnp.einsum("qd,kd->qk", q_ref[...], k_ref[...],
                        preferred_element_type=jnp.float32)
        if scale_factor != 1.0:
            qk = qk * jnp.float32(scale_factor)

        # Numerically stable softmax; divide on the EUP via approx reciprocal.
        m = jnp.max(qk, axis=-1, keepdims=True)
        e = jnp.exp(qk - m)
        inv = pl.reciprocal(jnp.sum(e, axis=-1, keepdims=True), approx=True)
        if mode in ("prng", "bits"):
            # Fold the dropout scale 1/(1-p) into the (S,1) reciprocal so the
            # full (S,S) tile sees a single multiply.
            inv = inv * jnp.float32(1.0 / (1.0 - dropout_p))
        p = e * inv

        # masked_fill AFTER softmax, broadcast over the key dim (matches module).
        if has_mask:
            p = jnp.where(mask_ref[...] != 0, -jnp.inf, p)

        # Dropout (training=True), integer-space keep test.  Multiplicative
        # form reproduces torch: dropped -inf -> NaN, kept -inf stays -inf.
        if mode == "prng":
            seed_ref = refs[idx]
            pltpu.prng_seed(seed_ref[0] + pl.program_id(0))
            bits = pltpu.bitcast(pltpu.prng_random_bits(p.shape), jnp.uint32)
        elif mode == "bits":
            bits = refs[idx][...]
        if mode in ("prng", "bits"):
            keep = bits >= jnp.uint32(_dropout_threshold(dropout_p))
            p = p * jnp.where(keep, jnp.float32(1.0), jnp.float32(0.0))

        # output = dropout_qk @ value  (p cast to v.dtype for a single-pass MXU op)
        o_ref[...] = jnp.einsum("qk,kd->qd", p.astype(v_ref.dtype), v_ref[...],
                                preferred_element_type=jnp.float32
                                ).astype(o_ref.dtype)

    return kernel


def sdpa_pallas(query, key, value, scale_factor, dropout_p, input_mask=None, seed=0):
    B, S, D = query.shape
    assert key.shape == (B, S, D) and value.shape == (B, S, D)
    dropout_p = float(dropout_p)
    has_mask = input_mask is not None
    out_dtype = query.dtype

    if dropout_p >= 1.0:
        mode = "full"
    elif dropout_p > 0.0:
        # In-kernel hardware PRNG on TPU; host-generated bits elsewhere
        # (interpret/CPU testing), where pltpu.prng_seed does not lower.
        mode = "prng" if jax.default_backend() == "tpu" else "bits"
    else:
        mode = "none"

    args, in_specs = [], []
    if mode != "full":
        # bf16 MXU feed (f32 accumulation inside the kernel); halves QKV DMA.
        for t in (query, key, value):
            args.append(t.astype(jnp.bfloat16))
            in_specs.append(pl.BlockSpec((None, S, D), lambda b: (b, 0, 0)))
    if has_mask:
        assert input_mask.shape == (B, S)
        # Tiny (B, S, 1) int32 mask (no f32 cast, no (B,S,S) materialization).
        args.append(jnp.asarray(input_mask, jnp.int32).reshape(B, S, 1))
        in_specs.append(pl.BlockSpec((None, S, 1), lambda b: (b, 0, 0)))
    if mode == "prng":
        args.append(jnp.asarray([int(seed)], jnp.int32))
        in_specs.append(pl.BlockSpec(memory_space=pltpu.MemorySpace.SMEM))
    elif mode == "bits":
        # TODO(synk): torch's dropout RNG stream cannot be reproduced bit-exactly;
        # the keep/drop pattern is drawn from jax.random instead.
        bits = jax.random.bits(jax.random.PRNGKey(seed), (B, S, S), dtype=jnp.uint32)
        args.append(bits)
        in_specs.append(pl.BlockSpec((None, S, S), lambda b: (b, 0, 0)))

    kernel = _make_sdpa_kernel(scale_factor, dropout_p, has_mask, mode)

    return pl.pallas_call(
        kernel,
        out_shape=jax.ShapeDtypeStruct((B, S, D), out_dtype),
        grid=(B,),  # real parallel axis: shards across the 2 TCs on v7x
        in_specs=in_specs,
        out_specs=pl.BlockSpec((None, S, D), lambda b: (b, 0, 0)),
        compiler_params=pltpu.CompilerParams(dimension_semantics=("parallel",)),
    )(*args)


def sdpa_reference_np(query, key, value, scale_factor, dropout_p,
                      input_mask=None, keep_mask=None):
    """Pure NumPy float64 reference of the torch module's forward pass."""
    q = np.asarray(query, np.float64)
    k = np.asarray(key, np.float64)
    v = np.asarray(value, np.float64)
    qk = np.einsum("bqd,bkd->bqk", q, k) * float(scale_factor)
    qk = qk - qk.max(axis=-1, keepdims=True)
    e = np.exp(qk)
    p = e / e.sum(axis=-1, keepdims=True)
    if input_mask is not None:
        p = np.where(np.asarray(input_mask, bool)[:, :, None], -np.inf, p)
    dropout_p = float(dropout_p)
    if dropout_p >= 1.0:
        p = p * 0.0                                     # torch: x * 0 (NaN for -inf)
    elif dropout_p > 0.0:
        p = p * (np.asarray(keep_mask, np.float64) * (1.0 / (1.0 - dropout_p)))
    return np.einsum("bqk,bkd->bqd", p, v)


if __name__ == "__main__":
    B, S, D = 2, 8, 512
    scale_factor = 1.0

    rng = jax.random.PRNGKey(0)
    kq, kk, kv = jax.random.split(rng, 3)
    # bf16-representable f32 inputs so the bf16 MXU feed is lossless and the
    # float64 comparison stays tight.
    query = jax.random.normal(kq, (B, S, D), jnp.float32).astype(jnp.bfloat16).astype(jnp.float32)
    key = jax.random.normal(kk, (B, S, D), jnp.float32).astype(jnp.bfloat16).astype(jnp.float32)
    value = jax.random.normal(kv, (B, S, D), jnp.float32).astype(jnp.bfloat16).astype(jnp.float32)

    # Boolean row mask (B, S): spirit of the original [[T,F,F],[T,T,F]] mask
    # (the original (2,3) mask is not broadcast-compatible with (2,8,8)).
    input_mask = jnp.arange(S)[None, :] < jnp.array([[1], [2]])
    mask_np = np.asarray(input_mask)

    # Case 1: the module's configuration (dropout_p = 1, mask present).
    out1 = jax.block_until_ready(sdpa_pallas(query, key, value, scale_factor, 1.0, input_mask))
    ref1 = sdpa_reference_np(query, key, value, scale_factor, 1.0, input_mask)
    assert out1.shape == (B, S, D)
    np.testing.assert_array_equal(np.asarray(out1), ref1)   # NaN on masked rows, 0 elsewhere

    # Case 2: no dropout, with mask (checks matmuls/softmax/mask path).
    out2 = jax.block_until_ready(sdpa_pallas(query, key, value, scale_factor, 0.0, input_mask))
    ref2 = sdpa_reference_np(query, key, value, scale_factor, 0.0, input_mask)
    np.testing.assert_allclose(np.asarray(out2)[~mask_np], ref2[~mask_np], rtol=3e-2, atol=3e-2)
    assert not np.isfinite(np.asarray(out2)[mask_np]).any()

    # Case 3: no dropout, no mask.
    out3 = jax.block_until_ready(sdpa_pallas(query, key, value, scale_factor, 0.0, None))
    ref3 = sdpa_reference_np(query, key, value, scale_factor, 0.0, None)
    np.testing.assert_allclose(np.asarray(out3), ref3, rtol=3e-2, atol=3e-2)

    # Case 4: partial dropout.  On TPU the bits come from the in-kernel PRNG
    # (not reproducible on the host), so this is a smoke/sanity check; on a
    # non-TPU backend the deterministic host-bits path would be used.
    p_drop, seed = 0.5, 123
    out4 = jax.block_until_ready(
        sdpa_pallas(query, key, value, scale_factor, p_drop, None, seed=seed))
    o4 = np.asarray(out4)
    assert out4.shape == (B, S, D)
    assert np.isfinite(o4).all()
    assert not np.allclose(o4, np.asarray(out3))   # dropout actually perturbed the output

    print("KERNEL_OK")
</pallas_src>

<mosaic_0001>
module attributes {stable_mosaic.version = 11 : i64} {
  func.func @kernel(%arg0: i32, %arg1: memref<1x8x1xi32, #tpu.memory_space<vmem>>, %arg2: memref<1x8x512xf32, #tpu.memory_space<vmem>>) attributes {dimension_semantics = [#tpu.dimension_semantics<parallel>], iteration_bounds = array<i64: 2>, scalar_prefetch = 0 : i64, scratch_operands = 0 : i64, tpu.core_type = #tpu.core_type<tc>, window_params = [{transform_indices = @transform_0, window_bounds = array<i64: 1, 8, 1>}, {transform_indices = @transform_1, window_bounds = array<i64: 1, 8, 512>}]} {
    %c0 = arith.constant 0 : index
    %c0_0 = arith.constant 0 : index
    %c0_1 = arith.constant 0 : index
    %0 = vector.load %arg1[%c0, %c0_0, %c0_1] : memref<1x8x1xi32, #tpu.memory_space<vmem>>, vector<1x8x1xi32>
    %1 = vector.shape_cast %0 : vector<1x8x1xi32> to vector<8x1xi32>
    %c0_i32 = arith.constant 0 : i32
    %2 = vector.broadcast %c0_i32 : i32 to vector<8x1xi32>
    %3 = arith.cmpi ne, %1, %2 : vector<8x1xi32>
    %cst = arith.constant 0.000000e+00 : f32
    %4 = vector.broadcast %cst : f32 to vector<8x512xf32>
    %cst_2 = arith.constant 0x7FC00000 : f32
    %5 = vector.shape_cast %3 : vector<8x1xi1> to vector<8x1xi1>
    %6 = vector.broadcast %5 : vector<8x1xi1> to vector<8x512xi1>
    %7 = vector.broadcast %cst_2 : f32 to vector<8x512xf32>
    %8 = arith.select %6, %7, %4 : vector<8x512xi1>, vector<8x512xf32>
    %c0_3 = arith.constant 0 : index
    %c0_4 = arith.constant 0 : index
    %c0_5 = arith.constant 0 : index
    %9 = vector.load %arg2[%c0_3, %c0_4, %c0_5] : memref<1x8x512xf32, #tpu.memory_space<vmem>>, vector<1x8x512xf32>
    %10 = vector.shape_cast %9 : vector<1x8x512xf32> to vector<8x512xf32>
    %11 = vector.shape_cast %8 : vector<8x512xf32> to vector<1x8x512xf32>
    tpu.vector_store %arg2[%c0_3, %c0_4, %c0_5], %11 {strides = array<i32>} : memref<1x8x512xf32, #tpu.memory_space<vmem>>, vector<1x8x512xf32>,
    return
  }
  func.func @transform_0(%arg0: i32) -> (i32, i32, i32) {
    %c0_i32 = arith.constant 0 : i32
    %c0_i32_0 = arith.constant 0 : i32
    %c0_i32_1 = arith.constant 0 : i32
    return %arg0, %c0_i32, %c0_i32_0 : i32, i32, i32
  }
  func.func @transform_1(%arg0: i32) -> (i32, i32, i32) {
    %c0_i32 = arith.constant 0 : i32
    %c0_i32_0 = arith.constant 0 : i32
    %c0_i32_1 = arith.constant 0 : i32
    return %arg0, %c0_i32, %c0_i32_0 : i32, i32, i32
  }
}

</mosaic_0001>

<llo_original>
// kernel: tpu_custom_call.1
$region0: #{tpu_custom_call.1}
  #allocation0 [shape = 'u32[]', space=smem, size = 0x4, offset = 0x4, fixed_abs, tag = 'smem constant byte address 0x4 - core index']
  #allocation1 [shape = 'u32[144,128]{1,0:T(1,128)}', space=vmem, size = 0x12000, scoped, tag = 'internal scratch']
  %s0 = inlined_call_operand.vmem [shape: s32[2,8,1], index: 0, kind: input, shape index: {}]
  %s1 = inlined_call_operand.hbm [shape: f32[2,8,512], index: 1, kind: output, shape index: {}]
  %s2 = sld [smem:[#allocation0]]
  $region37: #{tpu_custom_call.1} parent=0
    _
  %s4 = ssub.s32 1, %s2
  %s5 = scalar_select 0, %s4, %s2
  $region1: #{tpu_custom_call.1} parent=0
    #allocation2 [shape = 'u8[32768]{0}', space=vmem, size = 0x8000, scoped, tag = 'output window, operand 0']
    #allocation3 [shape = 's32[2]{0}', space=sflag, size = 0x8, scoped, tag = 'scoped memory for tpu_custom_call.1']
    %6 = vsyncpa [#allocation3], 0
    %s7 = scalar_lea.sflag [#allocation3], 1
    %8 = vsyncpa %s7, 0
    loop: start=0, step=1, limit=4
    $region2: #{tpu_custom_call.1} parent=1 // loop_pre_header
      _
    $region3: #{tpu_custom_call.1} parent=1 // loop_header
      %s10 = sphi 0, %s14
      %p11 = scmp.ge.s32.totalorder %s10, 4
      %s20 = sphi 0, %s22
      %s23 = sphi 0, %s20
      %s24 = sphi 0, %s23
      %s40 = sphi 0, %s24
      %s46 = sphi 0, %s48
      %s49 = sphi 0, %s46
      %s50 = sphi 0, %s49
      %s66 = sphi 0, %s50
    $region4: #{tpu_custom_call.1} parent=1 // loop_header_branch
      %13 = sbr.rel (%p11) target = $region8
    $region5: #{tpu_custom_call.1} parent=1 // loop_body
      %s15 = ssub.s32 %s10, 1
      %s16 = ssub.s32 %s10, 2
      %s17 = sadd.s32 %s10, 1
      %s18 = ssub.s32 %s10, %s17
      %p19 = scmp.eq.s32.totalorder %s18, 0
      %s21 = sadd.s32 %s20, 1
      %s22 = scalar_select %p19, %s20, %s21
      %p25 = pneg %p19
      %p26 = scmp.eq.s32.totalorder %s10, 1
      %p27 = por %p25, %p26
      %p28 = scmp.ne.s32.totalorder %s20, %s23
      %p29 = scmp.eq.s32.totalorder %s10, 0
      %p30 = por %p28, %p29
      %p31 = scmp.ne.s32.totalorder %s20, %s23
      %p32 = scmp.eq.s32.totalorder %s15, 1
      %p33 = por %p31, %p32
      %p34 = scmp.ne.s32.totalorder %s23, %s24
      %p35 = scmp.eq.s32.totalorder %s15, 0
      %p36 = por %p34, %p35
      %p37 = scmp.ne.s32.totalorder %s23, %s24
      %p38 = scmp.eq.s32.totalorder %s16, 1
      %p39 = por %p37, %p38
      %p41 = scmp.ne.s32.totalorder %s24, %s40
      %p42 = scmp.eq.s32.totalorder %s16, 0
      %p43 = por %p41, %p42
      %s44 = ssub.s32 %s10, %s17
      %p45 = scmp.eq.s32.totalorder %s44, 0
      %s47 = sadd.s32 %s46, 1
      %s48 = scalar_select %p45, %s46, %s47
      %p51 = pneg %p45
      %p52 = scmp.eq.s32.totalorder %s10, 1
      %p53 = por %p51, %p52
      %p54 = scmp.ne.s32.totalorder %s46, %s49
      %p55 = scmp.eq.s32.totalorder %s10, 0
      %p56 = por %p54, %p55
      %p57 = scmp.ne.s32.totalorder %s46, %s49
      %p58 = scmp.eq.s32.totalorder %s15, 1
      %p59 = por %p57, %p58
      %p60 = scmp.ne.s32.totalorder %s49, %s50
      %p61 = scmp.eq.s32.totalorder %s15, 0
      %p62 = por %p60, %p61
      %p63 = scmp.ne.s32.totalorder %s49, %s50
      %p64 = scmp.eq.s32.totalorder %s16, 1
      %p65 = por %p63, %p64
      %p67 = scmp.ne.s32.totalorder %s50, %s66
      %p68 = scmp.eq.s32.totalorder %s16, 0
      %p69 = por %p67, %p68
      %p70 = scmp.le.s32.totalorder 1, %s10
      %p71 = scmp.lt.s32.totalorder %s10, 3
      %p72 = pnand %p70, %p71
      %p73 = pneg %p72
      // Predicated region
      $region9: #{tpu_custom_call.1} parent=5 // pred_check
        _
      $region10: #{tpu_custom_call.1} parent=5 // pred_check_branch
        %75 = sbr.rel (%p72) target = $region12
      $region11: #{tpu_custom_call.1} parent=5 // pred_region
        %s76 = ssub.s32 %s10, 1
      $region12: #{tpu_custom_call.1} parent=5 // pred_fallthru
        _
      %p77 = scmp.lt.s32.totalorder %s10, 2
      // Predicated region
      $region13: #{tpu_custom_call.1} parent=5 // pred_check
        %p78 = pneg %p77
      $region14: #{tpu_custom_call.1} parent=5 // pred_check_branch
        %80 = sbr.rel (%p78) target = $region16
      $region15: #{tpu_custom_call.1} parent=5 // pred_region
        // Predicated region
        $region17: #{tpu_custom_call.1} parent=15 // pred_check
          %p81 = pneg %p30
        $region18: #{tpu_custom_call.1} parent=15 // pred_check_branch
          %83 = sbr.rel (%p81) target = $region20
        $region19: #{tpu_custom_call.1} parent=15 // pred_region
          %p84 = scmp.lt.s32.totalorder %s10, 1
          %s85 = scalar_select %p84, %s10, 1
          %s86 = smul.addr %s85, 8
          %s87 = scalar_lea.vmem %s0, %s86
        $region20: #{tpu_custom_call.1} parent=15 // pred_fallthru
          _
      $region16: #{tpu_custom_call.1} parent=5 // pred_fallthru
        _
      %p88 = scmp.le.s32.totalorder 1, %s10
      %p89 = scmp.lt.s32.totalorder %s10, 3
      %p90 = pnand %p88, %p89
      %p91 = pneg %p90
      // Predicated region
      $region21: #{tpu_custom_call.1} parent=5 // pred_check
        _
      $region22: #{tpu_custom_call.1} parent=5 // pred_check_branch
        %93 = sbr.rel (%p90) target = $region24
      $region23: #{tpu_custom_call.1} parent=5 // pred_region
        %s94 = ssub.s32 %s10, 1
        %p95 = scmp.lt.s32.totalorder %s15, 1
        %s96 = scalar_select %p95, %s15, 1
        %s97 = smul.addr %s96, 8
        %s98 = scalar_lea.vmem %s0, %s97
        %p99 = pneg %p36
        %p100 = pneg %p33
        %p101 = pneg %p62
        %p102 = pneg %p59
        %s103 = sand.u32 %s49, 1
        %s104 = scalar_lea.sflag [#allocation3], %s103
        %s105 = sand.u32 %s49, 1
        %s106 = smul.addr %s105, 32
        %s107 = scalar_lea.vmem [#allocation2], %s106
        %p108 = scmp.lt.s32.totalorder %s15, 1
        %s109 = scalar_select %p108, %s15, 1
        %s110 = smul.addr %s109, 8
        %s111 = scalar_lea.vmem %s0, %s110
        %v112 = vld [vmem:[%s111] sm:$0xff]
        %vm113 = vcmp.ne.s32.totalorder %v112, 0
        %v114 = vsel %vm113, 1, 0
        %115 = vset.pattern.permute.xlu0 0
        %116 = vperm.xlu0 %115, %v114
        %v117 = vpop.permute.xlu0 %116
        %vm118 = vcmp.eq.s32.totalorder %v117, 1
        %v119 = vsel %vm118, nan, 0.0
        %120 = vst [vmem:[%s107] sm:$0xff] %v119
        %121 = vst [vmem:[%s107 + $0x8] sm:$0xff] %v119
        %122 = vst [vmem:[%s107 + $0x10] sm:$0xff] %v119
        %123 = vst [vmem:[%s107 + $0x18] sm:$0xff] %v119
        %s124 = sand.u32 %s49, 1
        %s125 = scalar_lea.sflag [#allocation3], %s124
        %s126 = sand.u32 %s49, 1
        %s127 = smul.addr %s126, 32
        %s128 = scalar_lea.vmem [#allocation2], %s127
        // Predicated region
        $region25: #{tpu_custom_call.1} parent=23 // pred_check
          %p129 = pneg %p59
        $region26: #{tpu_custom_call.1} parent=23 // pred_check_branch
          %131 = sbr.rel (%p129) target = $region28
        $region27: #{tpu_custom_call.1} parent=23 // pred_region
          %s133 = ssub.s32 512, 512
          %134 = vsyncadd %s125, %s133
          %s135 = smul.addr %s15, 4
          %s136 = smul.addr %s135, 128
          %s137 = scalar_lea.hbm %s1, %s136
          %s139 = sshll.u32 %s128, 4
          %s140 = int_to_ptr.vmem [resolvable:$true] %s139
          %142 = dma.vmem_to_hbm [thread:$0]  %s140, 512, %s137, %s125
        $region28: #{tpu_custom_call.1} parent=23 // pred_fallthru
          _
      $region24: #{tpu_custom_call.1} parent=5 // pred_fallthru
        _
      %p143 = scmp.le.s32.totalorder 2, %s10
      // Predicated region
      $region29: #{tpu_custom_call.1} parent=5 // pred_check
        %p144 = pneg %p143
      $region30: #{tpu_custom_call.1} parent=5 // pred_check_branch
        %146 = sbr.rel (%p144) target = $region32
      $region31: #{tpu_custom_call.1} parent=5 // pred_region
        %s147 = ssub.s32 %s10, 2
        // Predicated region
        $region33: #{tpu_custom_call.1} parent=31 // pred_check
          %p148 = pneg %p65
        $region34: #{tpu_custom_call.1} parent=31 // pred_check_branch
          %150 = sbr.rel (%p148) target = $region36
        $region35: #{tpu_custom_call.1} parent=31 // pred_region
          %s151 = sand.u32 %s50, 1
          %s152 = scalar_lea.sflag [#allocation3], %s151
          %s153 = sand.u32 %s50, 1
          %s154 = smul.addr %s153, 32
          %s155 = scalar_lea.vmem [#allocation2], %s154
          %156 = dma.done %s152, 512
        $region36: #{tpu_custom_call.1} parent=31 // pred_fallthru
          _
      $region32: #{tpu_custom_call.1} parent=5 // pred_fallthru
        _
    $region6: #{tpu_custom_call.1} parent=1 // loop_footer
      %s14 = sadd.s32 1, %s10
    $region7: #{tpu_custom_call.1} parent=1 // loop_footer_branch
      %9 = sbr.rel target = $region3
    $region8: #{tpu_custom_call.1} parent=1 // loop_exit
      _
    %157 = vsyncpa [#allocation3], 1
    %s158 = scalar_lea.sflag [#allocation3], 1
    %159 = vsyncpa %s158, 1

</llo_original>
